<compile_context>
chip_gen: v5e
topology: v5e:2x2
jax: 0.10.0
libtpu: 0.0.40
codegen_flags: <defaults>
</compile_context>

<pallas_src>
import jax
import jax.numpy as jnp
from jax.experimental import pallas as pl
from jax.experimental.pallas import tpu as pltpu


def _spatial_attention_kernel(w_ref, tgt_ref, ctx_ref, wctx_ref, attn_ref,
                              st_ref, stT_ref):
    # w_ref   : (idf, cdf)         f32  conv1x1 weight (same block for all steps)
    # tgt_ref : (1, idf, tq)       f32  one batch / one queryL tile of the feature map
    # ctx_ref : (1, cdf, sourceL)  f32  one batch of context (same block across q)
    # wctx_ref: (1, idf, tq)            weightedContext output tile
    # attn_ref: (1, sourceL, tq)        attention output tile ((sourceL, queryL) layout)
    # st_ref  : (idf, sourceL)     bf16 scratch: sourceT        (persists across q tiles)
    # stT_ref : (sourceL, idf)     bf16 scratch: sourceT^T      (persists across q tiles)

    # conv1x1 == matmul: sourceT = W @ context, computed ONCE per batch.
    # q axis is "arbitrary" -> runs sequentially, so the scratch written at q == 0
    # is valid for all queryL tiles of this batch.
    @pl.when(pl.program_id(1) == 0)
    def _():
        w = w_ref[...].astype(jnp.bfloat16)                 # cast in-register
        ctx = ctx_ref[0].astype(jnp.bfloat16)
        sourceT = jnp.dot(w, ctx, preferred_element_type=jnp.float32)  # (idf, sourceL)
        st_ref[...] = sourceT.astype(jnp.bfloat16)
        # one tiny explicit transpose per batch instead of an implicit
        # transposed-LHS contraction inside every queryL tile
        stT_ref[...] = jnp.transpose(sourceT).astype(jnp.bfloat16)

    # f32 tile in VMEM, cast to bf16 in vregs right before the MXU op
    tgt = tgt_ref[0].astype(jnp.bfloat16)                   # (idf, tq)

    # scores directly in (sourceL, queryL) layout: standard-orientation matmul,
    # queryL sits on lanes so softmax/exp vregs and all stores are lane-dense.
    scores = jnp.dot(stT_ref[...], tgt,
                     preferred_element_type=jnp.float32)    # (sourceL, tq)

    # softmax over sourceL (axis 0), fully f32
    m = jnp.max(scores, axis=0, keepdims=True)
    e = jnp.exp(scores - m)
    denom = jnp.sum(e, axis=0, keepdims=True)
    p = e * pl.reciprocal(denom, approx=True)               # EUP slot, otherwise idle

    # weightedContext = sourceT @ p -> (idf, tq)
    wctx = jnp.dot(st_ref[...], p.astype(jnp.bfloat16),
                   preferred_element_type=jnp.float32)

    wctx_ref[0] = wctx.astype(wctx_ref.dtype)
    attn_ref[0] = p.astype(attn_ref.dtype)


def spatial_attention(x, context, weight, *, out_dtype=jnp.float32):
    """
    x       : (B, idf, ih, iw)   float32
    context : (B, cdf, sourceL)  float32
    weight  : (idf, cdf)         float32  (conv1x1 weight, squeezed)
    returns (weightedContext (B, idf, queryL), attn (B, sourceL, ih, iw)) in out_dtype.
    """
    B, idf, ih, iw = x.shape
    _, cdf, sourceL = context.shape
    queryL = ih * iw

    # Flatten spatial dims; inputs stay f32 (bf16 cast happens inside the kernel).
    target = x.reshape(B, idf, queryL)

    # Pad queryL up to a lane-dense multiple of 128 only when necessary
    # (never pad sourceL). When queryL is already aligned this is a no-op.
    Qp = ((queryL + 127) // 128) * 128
    if Qp != queryL:
        target = jnp.pad(target, ((0, 0), (0, 0), (0, Qp - queryL)))

    # Generation-aware VMEM budget: v7x has 64 MiB/TC, v5e/v6e have 128 MiB.
    try:
        vmem_cap = pltpu.get_tpu_info().vmem_capacity_bytes
    except Exception:
        vmem_cap = 64 * 1024 * 1024
    vmem_limit = min(96 * 1024 * 1024, (vmem_cap * 3) // 4)

    osz = jnp.dtype(out_dtype).itemsize

    def _tile_bytes(t):
        # double-buffered f32 target tile + output tiles (+ small fixed slack
        # for weight / context / sourceT scratch handled by the budget margin)
        return 2 * t * (4 * idf + osz * idf + osz * sourceL)

    # Largest queryL tile: a multiple of 128 dividing Qp (up to 2048, or the whole
    # map when small) that fits ~60% of the VMEM limit.
    budget = (vmem_limit * 3) // 5
    candidates = {t for t in range(128, min(Qp, 2048) + 1, 128) if Qp % t == 0}
    if Qp <= 4096:
        candidates.add(Qp)
    tq = 128
    for t in sorted(candidates):
        if _tile_bytes(t) <= budget:
            tq = t
    nq = Qp // tq

    # NOTE: for very small B * nq the whole kernel is per-step-overhead bound;
    # blocking several batches per grid step would amortize that further.

    wctx, attn = pl.pallas_call(
        _spatial_attention_kernel,
        out_shape=(
            jax.ShapeDtypeStruct((B, idf, Qp), out_dtype),
            jax.ShapeDtypeStruct((B, sourceL, Qp), out_dtype),
        ),
        grid_spec=pltpu.PrefetchScalarGridSpec(
            num_scalar_prefetch=0,
            grid=(B, nq),
            in_specs=[
                pl.BlockSpec((idf, cdf), lambda b, q: (0, 0)),            # weight (shared)
                pl.BlockSpec((1, idf, tq), lambda b, q: (b, 0, q)),       # target tile
                pl.BlockSpec((1, cdf, sourceL), lambda b, q: (b, 0, 0)),  # context (per batch)
            ],
            out_specs=[
                pl.BlockSpec((1, idf, tq), lambda b, q: (b, 0, q)),
                pl.BlockSpec((1, sourceL, tq), lambda b, q: (b, 0, q)),
            ],
            scratch_shapes=[
                pltpu.VMEM((idf, sourceL), jnp.bfloat16),   # sourceT
                pltpu.VMEM((sourceL, idf), jnp.bfloat16),   # sourceT^T
            ],
        ),
        compiler_params=pltpu.CompilerParams(
            # q must iterate sequentially (scratch hoist at q == 0); batch axis
            # is the parallel axis split across TensorCores on v7x.
            dimension_semantics=("parallel", "arbitrary"),
            vmem_limit_bytes=int(vmem_limit),
        ),
    )(weight, target, context)

    if Qp != queryL:
        wctx = wctx[:, :, :queryL]
        attn = attn[:, :, :queryL]
    attn = attn.reshape(B, sourceL, ih, iw)
    return wctx, attn


def _reference(x, context, weight):
    # Pure f32 reference matching the PyTorch module's forward.
    B, idf, ih, iw = x.shape
    _, cdf, sourceL = context.shape
    queryL = ih * iw
    target = x.reshape(B, idf, queryL)
    sourceT = jnp.einsum("oc,bcs->bos", weight, context)          # (B, idf, sourceL)
    attn = jnp.einsum("biq,bis->bqs", target, sourceT)            # (B, queryL, sourceL)
    attn = jax.nn.softmax(attn, axis=-1)
    attn_T = jnp.transpose(attn, (0, 2, 1))                       # (B, sourceL, queryL)
    wctx = jnp.einsum("bis,bsq->biq", sourceT, attn_T)            # (B, idf, queryL)
    return wctx, attn_T.reshape(B, sourceL, ih, iw)


if __name__ == "__main__":
    key = jax.random.PRNGKey(0)
    B, idf, cdf = 2, 32, 16
    ih = iw = 16                      # queryL = 256 (lane-dense, no pad/slice passes)
    sourceL = 8

    k1, k2, k3 = jax.random.split(key, 3)
    x = jax.random.normal(k1, (B, idf, ih, iw), dtype=jnp.float32)
    context = jax.random.normal(k2, (B, cdf, sourceL), dtype=jnp.float32)
    # deterministic conv1x1 (idf, cdf, 1, 1) weight, squeezed to (idf, cdf)
    weight = jax.random.normal(k3, (idf, cdf), dtype=jnp.float32) * 0.1

    wctx, attn = spatial_attention(x, context, weight)
    jax.block_until_ready((wctx, attn))

    wctx_ref, attn_ref = _reference(x, context, weight)
    assert wctx.shape == (B, idf, ih * iw)
    assert attn.shape == (B, sourceL, ih, iw)
    # bf16 MXU operands + approx reciprocal -> loosened tolerances vs f32 reference
    assert jnp.allclose(wctx, wctx_ref, atol=5e-2, rtol=5e-2), \
        float(jnp.max(jnp.abs(wctx - wctx_ref)))
    assert jnp.allclose(attn, attn_ref, atol=5e-2, rtol=5e-2), \
        float(jnp.max(jnp.abs(attn - attn_ref)))

    print("KERNEL_OK")
</pallas_src>

<mosaic_0001>
module attributes {stable_mosaic.version = 11 : i64} {
  func.func @_spatial_attention_kernel(%arg0: i32, %arg1: i32, %arg2: memref<32x16xf32, #tpu.memory_space<vmem>>, %arg3: memref<1x32x256xf32, #tpu.memory_space<vmem>>, %arg4: memref<1x16x8xf32, #tpu.memory_space<vmem>>, %arg5: memref<1x32x256xf32, #tpu.memory_space<vmem>>, %arg6: memref<1x8x256xf32, #tpu.memory_space<vmem>>, %arg7: memref<32x8xbf16, #tpu.memory_space<vmem>>, %arg8: memref<8x32xbf16, #tpu.memory_space<vmem>>) attributes {dimension_semantics = [#tpu.dimension_semantics<parallel>, #tpu.dimension_semantics<arbitrary>], iteration_bounds = array<i64: 2, 1>, scalar_prefetch = 0 : i64, scratch_operands = 2 : i64, tpu.core_type = #tpu.core_type<tc>, window_params = [{pipeline_mode = #tpu.pipeline_mode<synchronous>, transform_indices = @transform_0, window_bounds = array<i64: 32, 16>}, {transform_indices = @transform_1, window_bounds = array<i64: 1, 32, 256>}, {transform_indices = @transform_2, window_bounds = array<i64: 1, 16, 8>}, {transform_indices = @transform_3, window_bounds = array<i64: 1, 32, 256>}, {transform_indices = @transform_4, window_bounds = array<i64: 1, 8, 256>}]} {
    %c0_i32 = arith.constant 0 : i32
    %0 = arith.cmpi eq, %arg1, %c0_i32 : i32
    %1 = arith.extui %0 : i1 to i32
    %c0_i32_0 = arith.constant 0 : i32
    %2 = arith.cmpi ne, %1, %c0_i32_0 : i32
    scf.if %2 {
      %c0_16 = arith.constant 0 : index
      %c0_17 = arith.constant 0 : index
      %27 = vector.load %arg2[%c0_16, %c0_17] : memref<32x16xf32, #tpu.memory_space<vmem>>, vector<32x16xf32>
      %28 = arith.truncf %27 : vector<32x16xf32> to vector<32x16xbf16>
      %c0_18 = arith.constant 0 : index
      %c0_19 = arith.constant 0 : index
      %c0_20 = arith.constant 0 : index
      %29 = vector.load %arg4[%c0_18, %c0_19, %c0_20] : memref<1x16x8xf32, #tpu.memory_space<vmem>>, vector<1x16x8xf32>
      %30 = vector.shape_cast %29 : vector<1x16x8xf32> to vector<16x8xf32>
      %31 = arith.truncf %30 : vector<16x8xf32> to vector<16x8xbf16>
      %cst_21 = arith.constant dense<0.000000e+00> : vector<32x8xf32>
      %32 = tpu.matmul %28, %31, %cst_21 {dimension_numbers = #tpu.dot_dimension_numbers<[1], [0], [0], [1], [0, 0, 1, 1], [], []>} : vector<32x16xbf16>, vector<16x8xbf16>, vector<32x8xf32> -> vector<32x8xf32>
      %33 = arith.truncf %32 : vector<32x8xf32> to vector<32x8xbf16>
      %c0_22 = arith.constant 0 : index
      %c0_23 = arith.constant 0 : index
      %34 = vector.load %arg7[%c0_22, %c0_23] : memref<32x8xbf16, #tpu.memory_space<vmem>>, vector<32x8xbf16>
      tpu.vector_store %arg7[%c0_22, %c0_23], %33 {strides = array<i32>} : memref<32x8xbf16, #tpu.memory_space<vmem>>, vector<32x8xbf16>,
      %35 = tpu.transpose %32, [1, 0] : vector<32x8xf32> -> vector<8x32xf32>
      %36 = arith.truncf %35 : vector<8x32xf32> to vector<8x32xbf16>
      %c0_24 = arith.constant 0 : index
      %c0_25 = arith.constant 0 : index
      %37 = vector.load %arg8[%c0_24, %c0_25] : memref<8x32xbf16, #tpu.memory_space<vmem>>, vector<8x32xbf16>
      tpu.vector_store %arg8[%c0_24, %c0_25], %36 {strides = array<i32>} : memref<8x32xbf16, #tpu.memory_space<vmem>>, vector<8x32xbf16>,
    } else {
    }
    %c0 = arith.constant 0 : index
    %c0_1 = arith.constant 0 : index
    %c0_2 = arith.constant 0 : index
    %3 = vector.load %arg3[%c0, %c0_1, %c0_2] : memref<1x32x256xf32, #tpu.memory_space<vmem>>, vector<1x32x256xf32>
    %4 = vector.shape_cast %3 : vector<1x32x256xf32> to vector<32x256xf32>
    %5 = arith.truncf %4 : vector<32x256xf32> to vector<32x256xbf16>
    %c0_3 = arith.constant 0 : index
    %c0_4 = arith.constant 0 : index
    %6 = vector.load %arg8[%c0_3, %c0_4] : memref<8x32xbf16, #tpu.memory_space<vmem>>, vector<8x32xbf16>
    %cst = arith.constant dense<0.000000e+00> : vector<8x256xf32>
    %7 = tpu.matmul %6, %5, %cst {dimension_numbers = #tpu.dot_dimension_numbers<[1], [0], [0], [1], [0, 0, 1, 1], [], []>} : vector<8x32xbf16>, vector<32x256xbf16>, vector<8x256xf32> -> vector<8x256xf32>
    %cst_5 = arith.constant dense<0xFF800000> : vector<256xf32>
    %8 = vector.multi_reduction <maximumf>, %7, %cst_5 [0] : vector<8x256xf32> to vector<256xf32>
    %9 = vector.shape_cast %8 : vector<256xf32> to vector<1x256xf32>
    %10 = vector.broadcast %9 : vector<1x256xf32> to vector<8x256xf32>
    %11 = arith.subf %7, %10 : vector<8x256xf32>
    %12 = math.exp %11 : vector<8x256xf32>
    %cst_6 = arith.constant dense<0.000000e+00> : vector<256xf32>
    %13 = vector.multi_reduction <add>, %12, %cst_6 [0] : vector<8x256xf32> to vector<256xf32>
    %14 = vector.shape_cast %13 : vector<256xf32> to vector<1x256xf32>
    %15 = tpu.reciprocal %14 {approx = true} : vector<1x256xf32> -> vector<1x256xf32>
    %16 = vector.broadcast %15 : vector<1x256xf32> to vector<8x256xf32>
    %17 = arith.mulf %12, %16 : vector<8x256xf32>
    %c0_7 = arith.constant 0 : index
    %c0_8 = arith.constant 0 : index
    %18 = vector.load %arg7[%c0_7, %c0_8] : memref<32x8xbf16, #tpu.memory_space<vmem>>, vector<32x8xbf16>
    %19 = arith.truncf %17 : vector<8x256xf32> to vector<8x256xbf16>
    %cst_9 = arith.constant dense<0.000000e+00> : vector<32x256xf32>
    %20 = tpu.matmul %18, %19, %cst_9 {dimension_numbers = #tpu.dot_dimension_numbers<[1], [0], [0], [1], [0, 0, 1, 1], [], []>} : vector<32x8xbf16>, vector<8x256xbf16>, vector<32x256xf32> -> vector<32x256xf32>
    %c0_10 = arith.constant 0 : index
    %c0_11 = arith.constant 0 : index
    %c0_12 = arith.constant 0 : index
    %21 = vector.load %arg5[%c0_10, %c0_11, %c0_12] : memref<1x32x256xf32, #tpu.memory_space<vmem>>, vector<1x32x256xf32>
    %22 = vector.shape_cast %21 : vector<1x32x256xf32> to vector<32x256xf32>
    %23 = vector.shape_cast %20 : vector<32x256xf32> to vector<1x32x256xf32>
    tpu.vector_store %arg5[%c0_10, %c0_11, %c0_12], %23 {strides = array<i32>} : memref<1x32x256xf32, #tpu.memory_space<vmem>>, vector<1x32x256xf32>,
    %c0_13 = arith.constant 0 : index
    %c0_14 = arith.constant 0 : index
    %c0_15 = arith.constant 0 : index
    %24 = vector.load %arg6[%c0_13, %c0_14, %c0_15] : memref<1x8x256xf32, #tpu.memory_space<vmem>>, vector<1x8x256xf32>
    %25 = vector.shape_cast %24 : vector<1x8x256xf32> to vector<8x256xf32>
    %26 = vector.shape_cast %17 : vector<8x256xf32> to vector<1x8x256xf32>
    tpu.vector_store %arg6[%c0_13, %c0_14, %c0_15], %26 {strides = array<i32>} : memref<1x8x256xf32, #tpu.memory_space<vmem>>, vector<1x8x256xf32>,
    return
  }
  func.func @transform_0(%arg0: i32, %arg1: i32) -> (i32, i32) {
    %c0_i32 = arith.constant 0 : i32
    %c0_i32_0 = arith.constant 0 : i32
    %c0_i32_1 = arith.constant 0 : i32
    return %c0_i32, %c0_i32_0 : i32, i32
  }
  func.func @transform_1(%arg0: i32, %arg1: i32) -> (i32, i32, i32) {
    %c0_i32 = arith.constant 0 : i32
    %c0_i32_0 = arith.constant 0 : i32
    return %arg0, %c0_i32, %arg1 : i32, i32, i32
  }
  func.func @transform_2(%arg0: i32, %arg1: i32) -> (i32, i32, i32) {
    %c0_i32 = arith.constant 0 : i32
    %c0_i32_0 = arith.constant 0 : i32
    %c0_i32_1 = arith.constant 0 : i32
    return %arg0, %c0_i32, %c0_i32_0 : i32, i32, i32
  }
  func.func @transform_3(%arg0: i32, %arg1: i32) -> (i32, i32, i32) {
    %c0_i32 = arith.constant 0 : i32
    %c0_i32_0 = arith.constant 0 : i32
    return %arg0, %c0_i32, %arg1 : i32, i32, i32
  }
  func.func @transform_4(%arg0: i32, %arg1: i32) -> (i32, i32, i32) {
    %c0_i32 = arith.constant 0 : i32
    %c0_i32_0 = arith.constant 0 : i32
    return %arg0, %c0_i32, %arg1 : i32, i32, i32
  }
}

</mosaic_0001>

<llo_original>
// kernel: tpu_custom_call.1
$region0: #{tpu_custom_call.1}
  #allocation0 [shape = 'u32[]', space=smem, size = 0x4, offset = 0x4, fixed_abs, tag = 'smem constant byte address 0x4 - core index']
  #allocation1 [shape = 'u32[72,128]{1,0:T(1,128)}', space=vmem, size = 0x9000, scoped, tag = 'internal scratch']
  #allocation2 [shape = 'bf16[32,8]{1,0:T(8,128)(2,1)}', space=vmem, size = 0x2000, scoped, tag = 'scratch operand']
  #allocation3 [shape = 'bf16[8,32]{1,0:T(8,128)(2,1)}', space=vmem, size = 0x800, scoped, tag = 'scratch operand']
  %s0 = inlined_call_operand.vmem [shape: f32[32,16], index: 0, kind: input, shape index: {}]
  %s1 = inlined_call_operand.hbm [shape: f32[2,32,256], index: 1, kind: input, shape index: {}]
  %s2 = inlined_call_operand.vmem [shape: f32[2,16,8], index: 2, kind: input, shape index: {}]
  %s3 = inlined_call_operand.hbm [shape: f32[2,32,256], index: 3, kind: output, shape index: {0}]
  %s4 = inlined_call_operand.hbm [shape: f32[2,8,256], index: 4, kind: output, shape index: {1}]
  %5 = xla_tuple %s3, %s4
  %s6 = sld [smem:[#allocation0]]
  $region61: #{tpu_custom_call.1} parent=0
    _
  %s8 = ssub.s32 1, %s6
  %s9 = scalar_select 0, %s8, %s6
  $region1: #{tpu_custom_call.1} parent=0
    #allocation4 [shape = 'u8[65536]{0}', space=vmem, size = 0x10000, scoped, tag = 'input window, operand 1']
    #allocation5 [shape = 's32[2]{0}', space=sflag, size = 0x8, scoped, tag = 'scoped memory for tpu_custom_call.1']
    #allocation6 [shape = 's32[2]{0}', space=sflag, size = 0x8, scoped, tag = 'scoped memory for tpu_custom_call.1']
    #allocation7 [shape = 'u8[65536]{0}', space=vmem, size = 0x10000, scoped, tag = 'output window, operand 0']
    #allocation8 [shape = 'u8[16384]{0}', space=vmem, size = 0x4000, scoped, tag = 'output window, operand 1']
    #allocation9 [shape = 's32[2]{0}', space=sflag, size = 0x8, scoped, tag = 'scoped memory for tpu_custom_call.1']
    %10 = vsyncpa [#allocation5], 0
    %s11 = scalar_lea.sflag [#allocation5], 1
    %12 = vsyncpa %s11, 0
    %13 = vsyncpa [#allocation6], 0
    %s14 = scalar_lea.sflag [#allocation6], 1
    %15 = vsyncpa %s14, 0
    %16 = vsyncpa [#allocation9], 0
    %s17 = scalar_lea.sflag [#allocation9], 1
    %18 = vsyncpa %s17, 0
    loop: start=0, step=1, limit=4
    $region2: #{tpu_custom_call.1} parent=1 // loop_pre_header
      _
    $region3: #{tpu_custom_call.1} parent=1 // loop_header
      %s20 = sphi 0, %s24
      %p21 = scmp.ge.s32.totalorder %s20, 4
      %s27 = sphi 0, %s39
      %s28 = sphi 0, %s35
      %s29 = sphi 0, %s27
      %s30 = sphi 0, %s28
      %s31 = sphi 0, %s29
      %s32 = sphi 0, %s30
      %s40 = sphi 0, %s40
      %s42 = sphi 0, %s40
      %s43 = sphi 0, %s42
      %s57 = sphi 0, %s43
      %s65 = sphi 0, %s67
      %s68 = sphi 0, %s65
      %s69 = sphi 0, %s68
      %s85 = sphi 0, %s69
      %s91 = sphi 0, %s93
      %s94 = sphi 0, %s91
      %s95 = sphi 0, %s94
      %s111 = sphi 0, %s95
      %s119 = sphi 0, %s121
      %s122 = sphi 0, %s119
      %s123 = sphi 0, %s122
      %s139 = sphi 0, %s123
      %s147 = sphi 0, %s149
      %s150 = sphi 0, %s147
      %s151 = sphi 0, %s150
      %s167 = sphi 0, %s151
    $region4: #{tpu_custom_call.1} parent=1 // loop_header_branch
      %23 = sbr.rel (%p21) target = $region8
    $region5: #{tpu_custom_call.1} parent=1 // loop_body
      %s25 = ssub.s32 %s20, 1
      %s26 = ssub.s32 %s20, 2
      %s33 = sadd.s32 1, %s28
      %p34 = scmp.ge.s32.totalorder %s33, 1
      %s35 = scalar_select %p34, 0, %s33
      %s36 = sadd.s32 1, %s27
      %s37 = scalar_select %p34, %s36, %s27
      %p38 = scmp.ge.s32.totalorder %s37, 2
      %s39 = scalar_select %p38, 0, %s37
      %s41 = sadd.s32 %s40, 1
      %p44 = scmp.eq.s32.totalorder %s20, 1
      %p45 = scmp.ne.s32.totalorder %s40, %s42
      %p46 = scmp.eq.s32.totalorder %s20, 0
      %p47 = por %p45, %p46
      %p48 = scmp.ne.s32.totalorder %s40, %s42
      %p49 = scmp.eq.s32.totalorder %s25, 1
      %p50 = por %p48, %p49
      %p51 = scmp.ne.s32.totalorder %s42, %s43
      %p52 = scmp.eq.s32.totalorder %s25, 0
      %p53 = por %p51, %p52
      %p54 = scmp.ne.s32.totalorder %s42, %s43
      %p55 = scmp.eq.s32.totalorder %s26, 1
      %p56 = por %p54, %p55
      %p58 = scmp.ne.s32.totalorder %s43, %s57
      %p59 = scmp.eq.s32.totalorder %s26, 0
      %p60 = por %p58, %p59
      %s61 = ssub.s32 %s27, %s39
      %s62 = ssub.s32 %s28, %s35
      %s63 = sor.u32 %s61, %s62
      %p64 = scmp.eq.s32.totalorder %s63, 0
      %s66 = sadd.s32 %s65, 1
      %s67 = scalar_select %p64, %s65, %s66
      %p70 = pneg %p64
      %p71 = scmp.eq.s32.totalorder %s20, 1
      %p72 = por %p70, %p71
      %p73 = scmp.ne.s32.totalorder %s65, %s68
      %p74 = scmp.eq.s32.totalorder %s20, 0
      %p75 = por %p73, %p74
      %p76 = scmp.ne.s32.totalorder %s65, %s68
      %p77 = scmp.eq.s32.totalorder %s25, 1
      %p78 = por %p76, %p77
      %p79 = scmp.ne.s32.totalorder %s68, %s69
      %p80 = scmp.eq.s32.totalorder %s25, 0
      %p81 = por %p79, %p80
      %p82 = scmp.ne.s32.totalorder %s68, %s69
      %p83 = scmp.eq.s32.totalorder %s26, 1
      %p84 = por %p82, %p83
      %p86 = scmp.ne.s32.totalorder %s69, %s85
      %p87 = scmp.eq.s32.totalorder %s26, 0
      %p88 = por %p86, %p87
      %s89 = ssub.s32 %s27, %s39
      %p90 = scmp.eq.s32.totalorder %s89, 0
      %s92 = sadd.s32 %s91, 1
      %s93 = scalar_select %p90, %s91, %s92
      %p96 = pneg %p90
      %p97 = scmp.eq.s32.totalorder %s20, 1
      %p98 = por %p96, %p97
      %p99 = scmp.ne.s32.totalorder %s91, %s94
      %p100 = scmp.eq.s32.totalorder %s20, 0
      %p101 = por %p99, %p100
      %p102 = scmp.ne.s32.totalorder %s91, %s94
      %p103 = scmp.eq.s32.totalorder %s25, 1
      %p104 = por %p102, %p103
      %p105 = scmp.ne.s32.totalorder %s94, %s95
      %p106 = scmp.eq.s32.totalorder %s25, 0
      %p107 = por %p105, %p106
      %p108 = scmp.ne.s32.totalorder %s94, %s95
      %p109 = scmp.eq.s32.totalorder %s26, 1
      %p110 = por %p108, %p109
      %p112 = scmp.ne.s32.totalorder %s95, %s111
      %p113 = scmp.eq.s32.totalorder %s26, 0
      %p114 = por %p112, %p113
      %s115 = ssub.s32 %s27, %s39
      %s116 = ssub.s32 %s28, %s35
      %s117 = sor.u32 %s115, %s116
      %p118 = scmp.eq.s32.totalorder %s117, 0
      %s120 = sadd.s32 %s119, 1
      %s121 = scalar_select %p118, %s119, %s120
      %p124 = pneg %p118
      %p125 = scmp.eq.s32.totalorder %s20, 1
      %p126 = por %p124, %p125
      %p127 = scmp.ne.s32.totalorder %s119, %s122
      %p128 = scmp.eq.s32.totalorder %s20, 0
      %p129 = por %p127, %p128
      %p130 = scmp.ne.s32.totalorder %s119, %s122
      %p131 = scmp.eq.s32.totalorder %s25, 1
      %p132 = por %p130, %p131
      %p133 = scmp.ne.s32.totalorder %s122, %s123
      %p134 = scmp.eq.s32.totalorder %s25, 0
      %p135 = por %p133, %p134
      %p136 = scmp.ne.s32.totalorder %s122, %s123
      %p137 = scmp.eq.s32.totalorder %s26, 1
      %p138 = por %p136, %p137
      %p140 = scmp.ne.s32.totalorder %s123, %s139
      %p141 = scmp.eq.s32.totalorder %s26, 0
      %p142 = por %p140, %p141
      %s143 = ssub.s32 %s27, %s39
      %s144 = ssub.s32 %s28, %s35
      %s145 = sor.u32 %s143, %s144
      %p146 = scmp.eq.s32.totalorder %s145, 0
      %s148 = sadd.s32 %s147, 1
      %s149 = scalar_select %p146, %s147, %s148
      %p152 = pneg %p146
      %p153 = scmp.eq.s32.totalorder %s20, 1
      %p154 = por %p152, %p153
      %p155 = scmp.ne.s32.totalorder %s147, %s150
      %p156 = scmp.eq.s32.totalorder %s20, 0
      %p157 = por %p155, %p156
      %p158 = scmp.ne.s32.totalorder %s147, %s150
      %p159 = scmp.eq.s32.totalorder %s25, 1
      %p160 = por %p158, %p159
      %p161 = scmp.ne.s32.totalorder %s150, %s151
      %p162 = scmp.eq.s32.totalorder %s25, 0
      %p163 = por %p161, %p162
      %p164 = scmp.ne.s32.totalorder %s150, %s151
      %p165 = scmp.eq.s32.totalorder %s26, 1
      %p166 = por %p164, %p165
      %p168 = scmp.ne.s32.totalorder %s151, %s167
      %p169 = scmp.eq.s32.totalorder %s26, 0
      %p170 = por %p168, %p169
      %p171 = scmp.le.s32.totalorder 1, %s20
      %p172 = scmp.lt.s32.totalorder %s20, 3
      %p173 = pnand %p171, %p172
      %p174 = pneg %p173
      // Predicated region
      $region9: #{tpu_custom_call.1} parent=5 // pred_check
        _
      $region10: #{tpu_custom_call.1} parent=5 // pred_check_branch
        %176 = sbr.rel (%p173) target = $region12
      $region11: #{tpu_custom_call.1} parent=5 // pred_region
        %s177 = ssub.s32 %s20, 1
        // Predicated region
        $region13: #{tpu_custom_call.1} parent=11 // pred_check
          %p178 = pneg %p53
        $region14: #{tpu_custom_call.1} parent=11 // pred_check_branch
          %180 = sbr.rel (%p178) target = $region16
        $region15: #{tpu_custom_call.1} parent=11 // pred_region
          _
        $region16: #{tpu_custom_call.1} parent=11 // pred_fallthru
          _
      $region12: #{tpu_custom_call.1} parent=5 // pred_fallthru
        _
      %p181 = scmp.lt.s32.totalorder %s20, 2
      // Predicated region
      $region17: #{tpu_custom_call.1} parent=5 // pred_check
        %p182 = pneg %p181
      $region18: #{tpu_custom_call.1} parent=5 // pred_check_branch
        %184 = sbr.rel (%p182) target = $region20
      $region19: #{tpu_custom_call.1} parent=5 // pred_region
        // Predicated region
        $region21: #{tpu_custom_call.1} parent=19 // pred_check
          %p185 = pneg %p75
        $region22: #{tpu_custom_call.1} parent=19 // pred_check_branch
          %187 = sbr.rel (%p185) target = $region24
        $region23: #{tpu_custom_call.1} parent=19 // pred_region
          %s188 = sand.u32 %s65, 1
          %s189 = scalar_lea.sflag [#allocation5], %s188
          %s190 = sand.u32 %s65, 1
          %s191 = smul.addr %s190, 64
          %s192 = scalar_lea.vmem [#allocation4], %s191
          %s193 = smul.u32 2, %s28
          %195 = vsyncadd %s189, 0
          %s196 = smul.addr %s27, 8
          %s197 = sadd.s32 %s193, %s196
          %s198 = smul.addr %s197, 8
          %s199 = scalar_lea.hbm %s1, %s198
          %s200 = sshll.u32 %s199, 4
          %s201 = int_to_ptr.hbm [resolvable:$true] %s200
          %s202 = sshll.u32 %s192, 4
          %s203 = int_to_ptr.vmem [resolvable:$true] %s202
          %208 = dma.hbm_to_vmem [thread:$0]  %s201, 1024, %s203, %s189, 256, 256, 16
        $region24: #{tpu_custom_call.1} parent=19 // pred_fallthru
          _
        // Predicated region
        $region25: #{tpu_custom_call.1} parent=19 // pred_check
          %p209 = pneg %p101
        $region26: #{tpu_custom_call.1} parent=19 // pred_check_branch
          %211 = sbr.rel (%p209) target = $region28
        $region27: #{tpu_custom_call.1} parent=19 // pred_region
          %p212 = scmp.lt.s32.totalorder %s27, 1
          %s213 = scalar_select %p212, %s27, 1
          %s214 = smul.addr %s213, 2
          %s215 = smul.addr %s214, 8
          %s216 = scalar_lea.vmem %s2, %s215
        $region28: #{tpu_custom_call.1} parent=19 // pred_fallthru
          _
      $region20: #{tpu_custom_call.1} parent=5 // pred_fallthru
        _
      %p217 = scmp.le.s32.totalorder 1, %s20
      %p218 = scmp.lt.s32.totalorder %s20, 3
      %p219 = pnand %p217, %p218
      %p220 = pneg %p219
      // Predicated region
      $region29: #{tpu_custom_call.1} parent=5 // pred_check
        _
      $region30: #{tpu_custom_call.1} parent=5 // pred_check_branch
        %222 = sbr.rel (%p219) target = $region32
      $region31: #{tpu_custom_call.1} parent=5 // pred_region
        %s223 = ssub.s32 %s20, 1
        %s224 = sand.u32 %s68, 1
        %s225 = scalar_lea.sflag [#allocation5], %s224
        %s226 = sand.u32 %s68, 1
        %s227 = smul.addr %s226, 64
        %s228 = scalar_lea.vmem [#allocation4], %s227
        // Predicated region
        $region33: #{tpu_custom_call.1} parent=31 // pred_check
          %p229 = pneg %p81
        $region34: #{tpu_custom_call.1} parent=31 // pred_check_branch
          %231 = sbr.rel (%p229) target = $region36
        $region35: #{tpu_custom_call.1} parent=31 // pred_region
          %233 = dma.done %s225, 1024
        $region36: #{tpu_custom_call.1} parent=31 // pred_fallthru
          _
        %p234 = pneg %p53
        %p235 = pneg %p50
        %s236 = sand.u32 %s68, 1
        %s237 = scalar_lea.sflag [#allocation5], %s236
        %s238 = sand.u32 %s68, 1
        %s239 = smul.addr %s238, 64
        %s240 = scalar_lea.vmem [#allocation4], %s239
        %p241 = pneg %p81
        %p242 = pneg %p78
        %p243 = scmp.lt.s32.totalorder %s29, 1
        %s244 = scalar_select %p243, %s29, 1
        %s245 = smul.addr %s244, 2
        %s246 = smul.addr %s245, 8
        %s247 = scalar_lea.vmem %s2, %s246
        %p248 = pneg %p107
        %p249 = pneg %p104
        %p250 = pneg %p135
        %p251 = pneg %p132
        %s252 = sand.u32 %s122, 1
        %s253 = scalar_lea.sflag [#allocation6], %s252
        %s254 = sand.u32 %s122, 1
        %s255 = smul.addr %s254, 64
        %s256 = scalar_lea.vmem [#allocation7], %s255
        %p257 = pneg %p163
        %p258 = pneg %p160
        %s259 = sand.u32 %s150, 1
        %s260 = scalar_lea.sflag [#allocation9], %s259
        %s261 = sand.u32 %s150, 1
        %s262 = smul.addr %s261, 16
        %s263 = scalar_lea.vmem [#allocation8], %s262
        %s264 = smul.u32 2, %s30
        %p265 = scmp.lt.s32.totalorder %s29, 1
        %s266 = scalar_select %p265, %s29, 1
        %s267 = smul.addr %s266, 2
        %s268 = smul.addr %s267, 8
        %s269 = scalar_lea.vmem %s2, %s268
        %s270 = smul.u32 2, %s30
        %s271 = smul.u32 2, %s30
        %p273 = scmp.eq.s32.totalorder %s30, 0
        // Predicated region
        $region37: #{tpu_custom_call.1} parent=31 // pred_check
          %p274 = pneg %p273
        $region38: #{tpu_custom_call.1} parent=31 // pred_check_branch
          %276 = sbr.rel (%p274) target = $region40
        $region39: #{tpu_custom_call.1} parent=31 // pred_region
          %v277 = vld [vmem:[%s0] sm:$0xff]
          %v278 = vld [vmem:[%s0 + $0x8] sm:$0xff]
          %v279 = vld [vmem:[%s0 + $0x10] sm:$0xff]
          %v280 = vld [vmem:[%s0 + $0x18] sm:$0xff]
          %v281 = vpack.c.bf16 %v278, %v277
          %v282 = vpack.c.bf16 %v280, %v279
          %v283 = vld [vmem:[%s269] sm:$0xff]
          %v284 = vld [vmem:[%s269 + $0x8] sm:$0xff]
          %v285 = vpack.c.bf16 %v284, %v283
          %vm286 = vcmask 130048
          %v288 = vsel %vm286, %v281, 0
          %v291 = vsel %vm286, %v282, 0
          %293 = vmatpush.bf16.msra.mxu0 0
          %294 = vmatpush.bf16.msra.mxu0 0
          %295 = vmatpush.bf16.msra.mxu0 0
          %296 = vmatpush.bf16.msra.mxu0 0
          %297 = vmatpush.bf16.msra.mxu0 0
          %298 = vmatpush.bf16.msra.mxu0 0
          %299 = vmatpush.bf16.msra.mxu0 0
          %300 = vmatpush.bf16.msra.mxu0 %v285
          %301 = vmatmul.bf16.gmra.mxu0 %v288
          %v302 = vpop.f32.mrf.mxu0
          %v303 = vadd.f32 0.0, %v302
          %v304 = vpop.f32.mrf.mxu0
          %v305 = vadd.f32 0.0, %v304
          %306 = vmatmul.bf16.gmra.mxu0 %v291
          %v307 = vpop.f32.mrf.mxu0
          %v308 = vadd.f32 0.0, %v307
          %v309 = vpop.f32.mrf.mxu0
          %v310 = vadd.f32 0.0, %v309
          %311 = vdwg.mxu0
          %v312 = vpack.c.bf16 %v303, %v303
          %v313 = vpack.c.bf16 %v305, %v305
          %v314 = vpack.c.bf16 %v308, %v308
          %v315 = vpack.c.bf16 %v310, %v310
          %vm316 = vcmask 60416
          %317 = vst.msk [vmem:[#allocation2] sm:$0xf] %vm316, %v312
          %318 = vst.msk [vmem:[#allocation2 + $0x4] sm:$0xf] %vm316, %v313
          %319 = vst.msk [vmem:[#allocation2 + $0x8] sm:$0xf] %vm316, %v314
          %320 = vst.msk [vmem:[#allocation2 + $0xc] sm:$0xf] %vm316, %v315
          %321 = vxpose.xlu0.b32.start [1/16] %v303, 128
          %322 = vxpose.xlu0.b32.cont [2/16] %v305, 128
          %323 = vxpose.xlu0.b32.cont [3/16] %v308, 128
          %324 = vxpose.xlu0.b32.cont [4/16] %v310, 128
          %325 = vxpose.xlu0.b32.cont [5/16] 0.0, 128
          %326 = vxpose.xlu0.b32.cont [6/16] 0.0, 128
          %327 = vxpose.xlu0.b32.cont [7/16] 0.0, 128
          %328 = vxpose.xlu0.b32.cont [8/16] 0.0, 128
          %329 = vxpose.xlu0.b32.cont [9/16] 0.0, 128
          %330 = vxpose.xlu0.b32.cont [10/16] 0.0, 128
          %331 = vxpose.xlu0.b32.cont [11/16] 0.0, 128
          %332 = vxpose.xlu0.b32.cont [12/16] 0.0, 128
          %333 = vxpose.xlu0.b32.cont [13/16] 0.0, 128
          %334 = vxpose.xlu0.b32.cont [14/16] 0.0, 128
          %335 = vxpose.xlu0.b32.cont [15/16] 0.0, 128
          %336 = vxpose.xlu0.b32.end [16/16] 0.0, 128
          %v337 = vpop.trf.xlu0
          %v338 = vpop.trf.xlu0
          %v339 = vpop.trf.xlu0
          %v340 = vpop.trf.xlu0
          %v341 = vpop.trf.xlu0
          %v342 = vpop.trf.xlu0
          %v343 = vpop.trf.xlu0
          %v344 = vpop.trf.xlu0
          %v345 = vpop.trf.xlu0
          %v346 = vpop.trf.xlu0
          %v347 = vpop.trf.xlu0
          %v348 = vpop.trf.xlu0
          %v349 = vpop.trf.xlu0
          %v350 = vpop.trf.xlu0
          %v351 = vpop.trf.xlu0
          %v352 = vpop.trf.xlu0
          %v353 = vpack.c.bf16 %v337, %v337
          %vm354 = vcmask 257024
          %355 = vst.msk [vmem:[#allocation3] sm:$0xf] %vm354, %v353
        $region40: #{tpu_custom_call.1} parent=31 // pred_fallthru
          _
        %v356 = vld [vmem:[%s228] sm:$0xff]
        %v357 = vld [vmem:[%s228 + $0x8] sm:$0xff]
        %v358 = vld [vmem:[%s228 + $0x10] sm:$0xff]
        %v359 = vld [vmem:[%s228 + $0x18] sm:$0xff]
        %v360 = vld [vmem:[%s228 + $0x20] sm:$0xff]
        %v361 = vld [vmem:[%s228 + $0x28] sm:$0xff]
        %v362 = vld [vmem:[%s228 + $0x30] sm:$0xff]
        %v363 = vld [vmem:[%s228 + $0x38] sm:$0xff]
        %v364 = vpack.c.bf16 %v358, %v356
        %v365 = vpack.c.bf16 %v359, %v357
        %v366 = vpack.c.bf16 %v362, %v360
        %v367 = vpack.c.bf16 %v363, %v361
        %v368 = vld [vmem:[#allocation3] sm:$0xf]
        %vm369 = vcmask 261120
        %v371 = vsel %vm369, %v368, 0
        %373 = vmatpush.bf16.msra.mxu0 0
        %374 = vmatpush.bf16.msra.mxu0 0
        %375 = vmatpush.bf16.msra.mxu0 0
        %376 = vmatpush.bf16.msra.mxu0 0
        %377 = vmatpush.bf16.msra.mxu0 0
        %378 = vmatpush.bf16.msra.mxu0 0
        %379 = vmatpush.bf16.msra.mxu0 %v366
        %380 = vmatpush.bf16.msra.mxu0 %v364
        %381 = vmatmul.bf16.gmra.mxu0 %v371
        %v382 = vpop.f32.mrf.mxu0
        %v383 = vadd.f32 0.0, %v382
        %v384 = vpop.f32.mrf.mxu0
        %385 = vdwg.mxu0
        %386 = vmatpush.bf16.msra.mxu0 0
        %387 = vmatpush.bf16.msra.mxu0 0
        %388 = vmatpush.bf16.msra.mxu0 0
        %389 = vmatpush.bf16.msra.mxu0 0
        %390 = vmatpush.bf16.msra.mxu0 0
        %391 = vmatpush.bf16.msra.mxu0 0
        %392 = vmatpush.bf16.msra.mxu0 %v367
        %393 = vmatpush.bf16.msra.mxu0 %v365
        %394 = vmatmul.bf16.gmra.mxu0 %v371
        %v395 = vpop.f32.mrf.mxu0
        %v396 = vadd.f32 0.0, %v395
        %v397 = vpop.f32.mrf.mxu0
        %398 = vdwg.mxu0
        %v399 = vrot.slane %v383, 4
        %v400 = vmax.f32 %v383, %v399
        %v401 = vrot.slane %v400, 2
        %v402 = vmax.f32 %v400, %v401
        %v403 = vrot.slane %v402, 1
        %v404 = vmax.f32 %v402, %v403
        %v405 = vrot.slane %v396, 4
        %v406 = vmax.f32 %v396, %v405
        %v407 = vrot.slane %v406, 2
        %v408 = vmax.f32 %v406, %v407
        %v409 = vrot.slane %v408, 1
        %v410 = vmax.f32 %v408, %v409
        %v411 = vsub.f32 %v383, %v404
        %v412 = vsub.f32 %v396, %v410
        %v413 = vmul.f32 %v411, 1.442695
        %v414 = vpow.pop %v413
        %v415 = vmul.f32 %v412, 1.442695
        %v416 = vpow.pop %v415
        %v417 = vrot.slane %v414, 4
        %v418 = vadd.f32 %v414, %v417
        %v419 = vrot.slane %v418, 2
        %v420 = vadd.f32 %v418, %v419
        %v421 = vrot.slane %v420, 1
        %v422 = vadd.f32 %v420, %v421
        %v423 = vrot.slane %v416, 4
        %v424 = vadd.f32 %v416, %v423
        %v425 = vrot.slane %v424, 2
        %v426 = vadd.f32 %v424, %v425
        %v427 = vrot.slane %v426, 1
        %v428 = vadd.f32 %v426, %v427
        %v429 = vrcp.pop %v422
        %v430 = vrcp.pop %v428
        %v431 = vmul.f32 %v414, %v429
        %v432 = vmul.f32 %v416, %v430
        %v433 = vld [vmem:[#allocation2] sm:$0xf]
        %v434 = vld [vmem:[#allocation2 + $0x4] sm:$0xf]
        %v435 = vld [vmem:[#allocation2 + $0x8] sm:$0xf]
        %v436 = vld [vmem:[#allocation2 + $0xc] sm:$0xf]
        %v437 = vpack.c.bf16 %v431, %v431
        %v438 = vpack.c.bf16 %v432, %v432
        %v443 = vunpack.c.l.b16 %v433
        %v444 = vunpack.c.l.b16 %v434
        %v445 = vunpack.c.l.b16 %v435
        %v446 = vunpack.c.l.b16 %v436
        %v447 = vpack.c.b16 %v444, %v443
        %v448 = vpack.c.b16 %v446, %v445
        %vm449 = vcmask 64512
        %v451 = vsel %vm449, %v447, 0
        %v454 = vsel %vm449, %v448, 0
        %vm456 = vcmask 1043456
        %v458 = vsel %vm456, %v437, 0
        %v461 = vsel %vm456, %v438, 0
        %463 = vmatpush.bf16.msra.mxu0 0
        %464 = vmatpush.bf16.msra.mxu0 0
        %465 = vmatpush.bf16.msra.mxu0 0
        %466 = vmatpush.bf16.msra.mxu0 0
        %467 = vmatpush.bf16.msra.mxu0 0
        %468 = vmatpush.bf16.msra.mxu0 0
        %469 = vmatpush.bf16.msra.mxu0 0
        %470 = vmatpush.bf16.msra.mxu0 %v458
        %471 = vmatmul.bf16.gmra.mxu0 %v451
        %v472 = vpop.f32.mrf.mxu0
        %v473 = vadd.f32 0.0, %v472
        %v474 = vpop.f32.mrf.mxu0
        %v475 = vadd.f32 0.0, %v474
        %476 = vmatmul.bf16.gmra.mxu0 %v454
        %v477 = vpop.f32.mrf.mxu0
        %v478 = vadd.f32 0.0, %v477
        %v479 = vpop.f32.mrf.mxu0
        %v480 = vadd.f32 0.0, %v479
        %481 = vdwg.mxu0
        %482 = vmatpush.bf16.msra.mxu0 0
        %483 = vmatpush.bf16.msra.mxu0 0
        %484 = vmatpush.bf16.msra.mxu0 0
        %485 = vmatpush.bf16.msra.mxu0 0
        %486 = vmatpush.bf16.msra.mxu0 0
        %487 = vmatpush.bf16.msra.mxu0 0
        %488 = vmatpush.bf16.msra.mxu0 0
        %489 = vmatpush.bf16.msra.mxu0 %v461
        %490 = vmatmul.bf16.gmra.mxu0 %v451
        %v491 = vpop.f32.mrf.mxu0
        %v492 = vadd.f32 0.0, %v491
        %v493 = vpop.f32.mrf.mxu0
        %v494 = vadd.f32 0.0, %v493
        %495 = vmatmul.bf16.gmra.mxu0 %v454
        %v496 = vpop.f32.mrf.mxu0
        %v497 = vadd.f32 0.0, %v496
        %v498 = vpop.f32.mrf.mxu0
        %v499 = vadd.f32 0.0, %v498
        %500 = vdwg.mxu0
        %501 = vst [vmem:[%s256] sm:$0xff] %v473
        %502 = vst [vmem:[%s256 + $0x8] sm:$0xff] %v492
        %503 = vst [vmem:[%s256 + $0x10] sm:$0xff] %v475
        %504 = vst [vmem:[%s256 + $0x18] sm:$0xff] %v494
        %505 = vst [vmem:[%s256 + $0x20] sm:$0xff] %v478
        %506 = vst [vmem:[%s256 + $0x28] sm:$0xff] %v497
        %507 = vst [vmem:[%s256 + $0x30] sm:$0xff] %v480
        %508 = vst [vmem:[%s256 + $0x38] sm:$0xff] %v499
        %509 = vst [vmem:[%s263] sm:$0xff] %v431
        %510 = vst [vmem:[%s263 + $0x8] sm:$0xff] %v432
        %s511 = sand.u32 %s122, 1
        %s512 = scalar_lea.sflag [#allocation6], %s511
        %s513 = sand.u32 %s122, 1
        %s514 = smul.addr %s513, 64
        %s515 = scalar_lea.vmem [#allocation7], %s514
        %s516 = sand.u32 %s150, 1
        %s517 = scalar_lea.sflag [#allocation9], %s516
        %s518 = sand.u32 %s150, 1
        %s519 = smul.addr %s518, 16
        %s520 = scalar_lea.vmem [#allocation8], %s519
        // Predicated region
        $region41: #{tpu_custom_call.1} parent=31 // pred_check
          %p521 = pneg %p132
        $region42: #{tpu_custom_call.1} parent=31 // pred_check_branch
          %523 = sbr.rel (%p521) target = $region44
        $region43: #{tpu_custom_call.1} parent=31 // pred_region
          %s524 = smul.u32 2, %s30
          %526 = vsyncadd %s512, 0
          %s527 = smul.addr %s29, 8
          %s528 = sadd.s32 %s524, %s527
          %s529 = smul.addr %s528, 8
          %s530 = scalar_lea.hbm %s3, %s529
          %s531 = sshll.u32 %s515, 4
          %s532 = int_to_ptr.vmem [resolvable:$true] %s531
          %s533 = sshll.u32 %s530, 4
          %s534 = int_to_ptr.hbm [resolvable:$true] %s533
          %539 = dma.vmem_to_hbm [thread:$0]  %s532, 1024, %s534, %s512, 256, 256, 16
        $region44: #{tpu_custom_call.1} parent=31 // pred_fallthru
          _
        // Predicated region
        $region45: #{tpu_custom_call.1} parent=31 // pred_check
          %p540 = pneg %p160
        $region46: #{tpu_custom_call.1} parent=31 // pred_check_branch
          %542 = sbr.rel (%p540) target = $region48
        $region47: #{tpu_custom_call.1} parent=31 // pred_region
          %s543 = smul.u32 2, %s30
          %545 = vsyncadd %s517, 0
          %s546 = smul.addr %s29, 2
          %s547 = sadd.s32 %s543, %s546
          %s548 = smul.addr %s547, 8
          %s549 = scalar_lea.hbm %s4, %s548
          %s551 = sshll.u32 %s520, 4
          %s552 = int_to_ptr.vmem [resolvable:$true] %s551
          %s553 = sshll.u32 %s549, 4
          %s554 = int_to_ptr.hbm [resolvable:$true] %s553
          %556 = dma.vmem_to_hbm [thread:$0]  %s552, 256, %s554, %s517
        $region48: #{tpu_custom_call.1} parent=31 // pred_fallthru
          _
      $region32: #{tpu_custom_call.1} parent=5 // pred_fallthru
        _
      %p557 = scmp.le.s32.totalorder 2, %s20
      // Predicated region
      $region49: #{tpu_custom_call.1} parent=5 // pred_check
        %p558 = pneg %p557
      $region50: #{tpu_custom_call.1} parent=5 // pred_check_branch
        %560 = sbr.rel (%p558) target = $region52
      $region51: #{tpu_custom_call.1} parent=5 // pred_region
        %s561 = ssub.s32 %s20, 2
        // Predicated region
        $region53: #{tpu_custom_call.1} parent=51 // pred_check
          %p562 = pneg %p138
        $region54: #{tpu_custom_call.1} parent=51 // pred_check_branch
          %564 = sbr.rel (%p562) target = $region56
        $region55: #{tpu_custom_call.1} parent=51 // pred_region
          %s565 = sand.u32 %s123, 1
          %s566 = scalar_lea.sflag [#allocation6], %s565
          %s567 = sand.u32 %s123, 1
          %s568 = smul.addr %s567, 64
          %s569 = scalar_lea.vmem [#allocation7], %s568
          %571 = dma.done %s566, 1024
        $region56: #{tpu_custom_call.1} parent=51 // pred_fallthru
          _
        // Predicated region
        $region57: #{tpu_custom_call.1} parent=51 // pred_check
          %p572 = pneg %p166
        $region58: #{tpu_custom_call.1} parent=51 // pred_check_branch
          %574 = sbr.rel (%p572) target = $region60
        $region59: #{tpu_custom_call.1} parent=51 // pred_region
          %s575 = sand.u32 %s151, 1
          %s576 = scalar_lea.sflag [#allocation9], %s575
          %s577 = sand.u32 %s151, 1
          %s578 = smul.addr %s577, 16
          %s579 = scalar_lea.vmem [#allocation8], %s578
          %581 = dma.done %s576, 256
        $region60: #{tpu_custom_call.1} parent=51 // pred_fallthru
          _
      $region52: #{tpu_custom_call.1} parent=5 // pred_fallthru
        _
    $region6: #{tpu_custom_call.1} parent=1 // loop_footer
      %s24 = sadd.s32 1, %s20
    $region7: #{tpu_custom_call.1} parent=1 // loop_footer_branch
      %19 = sbr.rel target = $region3
    $region8: #{tpu_custom_call.1} parent=1 // loop_exit
      _
    %582 = vsyncpa [#allocation5], 1
    %s583 = scalar_lea.sflag [#allocation5], 1
    %584 = vsyncpa %s583, 1
    %585 = vsyncpa [#allocation6], 1
    %s586 = scalar_lea.sflag [#allocation6], 1
    %587 = vsyncpa %s586, 1
    %588 = vsyncpa [#allocation9], 1
    %s589 = scalar_lea.sflag [#allocation9], 1
    %590 = vsyncpa %s589, 1

</llo_original>
